<compile_context>
chip_gen: v7x
topology: tpu7x:2x2x1
jax: 0.10.0
libtpu: 0.0.40
codegen_flags: <defaults>
</compile_context>

<pallas_src>
import functools

import jax
import jax.numpy as jnp
from jax.experimental import pallas as pl
from jax.experimental.pallas import tpu as pltpu

LANE = 512  # lane-axis width of each block (multiple of 128)


def _make_kernel(cin, cout):
    def kernel(x_ref, w_ref, b_ref, o_ref):
        # x_ref: (1, Cin, TR, LANE) VMEM -- dense (8,128)-aligned channel tiles
        # w_ref: (Cout, Cin) SMEM    b_ref: (Cout,) SMEM
        # o_ref: (1, Cout, TR, LANE) VMEM
        xs = [x_ref[0, c, :, :].astype(jnp.float32) for c in range(cin)]
        for o in range(cout):
            acc = xs[0] * w_ref[o, 0]
            for c in range(1, cin):
                acc = acc + xs[c] * w_ref[o, c]
            acc = acc + b_ref[o]
            o_ref[0, o, :, :] = jax.nn.sigmoid(acc).astype(o_ref.dtype)
    return kernel


def _round_down_mult(x, m):
    return (x // m) * m


def _choose_tile_rows(n, rows, target_voxels, min_steps):
    """Rows per block: ~target_voxels voxels, multiple of 8 (or full extent),
    and enough total grid steps to keep v7x's two TensorCores busy."""
    tr = min(rows, max(1, target_voxels // LANE))
    if rows >= 8:
        tr = max(8, _round_down_mult(tr, 8))
    # Don't let one block swallow the voxel axis when that starves the grid.
    while rows >= 16 and tr > 8 and n * pl.cdiv(rows, tr) < min_steps:
        tr = max(8, _round_down_mult(max(tr // 2, 8), 8))
        if n * pl.cdiv(rows, tr) >= min_steps or tr == 8:
            break
    return tr


@functools.partial(jax.jit, static_argnames=("target_voxels", "min_steps"))
def output_transition(x, weight, bias, target_voxels=256 * 1024, min_steps=8):
    """x: (N, Cin, D, H, W)  weight: (Cout, Cin, 1, 1, 1)  bias: (Cout,)"""
    n, cin, d, h, w = x.shape
    cout = weight.shape[0]
    m = d * h * w
    m_pad = pl.cdiv(m, LANE) * LANE

    # Pure view of NCDHW; pad the flattened voxel axis only if M % LANE != 0.
    x3 = x.reshape(n, cin, m)
    if m_pad != m:
        x3 = jnp.pad(x3, ((0, 0), (0, 0), (0, m_pad - m)))
    rows = m_pad // LANE
    x4 = x3.reshape(n, cin, rows, LANE)

    w2 = weight.reshape(cout, cin)   # (Cout, Cin) -> SMEM scalars
    b1 = bias.reshape(cout)          # (Cout,)     -> SMEM scalars

    tr = _choose_tile_rows(n, rows, target_voxels, min_steps)
    grid_r = pl.cdiv(rows, tr)

    out4 = pl.pallas_call(
        _make_kernel(cin, cout),
        out_shape=jax.ShapeDtypeStruct((n, cout, rows, LANE), x.dtype),
        grid_spec=pltpu.PrefetchScalarGridSpec(
            num_scalar_prefetch=0,
            grid=(n, grid_r),
            in_specs=[
                # dense 2-D voxel tile per channel: (rows, lanes) = (tr, LANE)
                pl.BlockSpec((1, cin, tr, LANE), lambda i, j: (i, 0, j, 0)),
                # tiny conv params live in SMEM, read as scalars
                pl.BlockSpec(memory_space=pltpu.MemorySpace.SMEM),
                pl.BlockSpec(memory_space=pltpu.MemorySpace.SMEM),
            ],
            out_specs=pl.BlockSpec((1, cout, tr, LANE), lambda i, j: (i, 0, j, 0)),
        ),
        compiler_params=pltpu.CompilerParams(
            dimension_semantics=("parallel", "parallel"),
            # ~14 MiB double-buffered at 256K voxels/block: raise v5e's 16 MiB
            # scoped default, stay within v7x's 32 MiB scoped / 64 MiB physical.
            vmem_limit_bytes=32 * 1024 * 1024,
        ),
    )(x4, w2, b1)

    # (N, Cout, rows, LANE) -> (N, Cout, M) is NCDHW-contiguous; strip padding.
    out = out4.reshape(n, cout, m_pad)[:, :, :m]
    return out.reshape(n, cout, d, h, w)


def _reference(x, weight, bias):
    # Pure-JAX reference: 1x1x1 conv == einsum over channels, then sigmoid.
    w2d = weight.reshape(weight.shape[0], weight.shape[1])
    y = jnp.einsum("ncdhw,oc->nodhw", x, w2d) + bias[None, :, None, None, None]
    return jax.nn.sigmoid(y)


if __name__ == "__main__":
    # Small shapes consistent with the module: N=2, inChans=4, n_labels=3, spatial 16^3.
    n, in_chans, n_labels = 2, 4, 3
    d = h = w = 16

    key = jax.random.PRNGKey(0)
    kx, kw, kb = jax.random.split(key, 3)

    x = jax.random.normal(kx, (n, in_chans, d, h, w), dtype=jnp.float32)
    weight = jax.random.normal(kw, (n_labels, in_chans, 1, 1, 1), dtype=jnp.float32) * 0.1
    bias = jax.random.normal(kb, (n_labels,), dtype=jnp.float32) * 0.1

    out = output_transition(x, weight, bias)
    out = jax.block_until_ready(out)

    ref = _reference(x, weight, bias)
    assert out.shape == (n, n_labels, d, h, w)
    assert jnp.allclose(out, ref, atol=1e-5, rtol=1e-5)

    print("KERNEL_OK")
</pallas_src>

<mosaic_0001>
module attributes {stable_mosaic.version = 11 : i64} {
  func.func @kernel(%arg0: i32, %arg1: i32, %arg2: memref<1x4x8x512xf32, #tpu.memory_space<vmem>>, %arg3: memref<3x4xf32, #tpu.memory_space<smem>>, %arg4: memref<3xf32, #tpu.memory_space<smem>>, %arg5: memref<1x3x8x512xf32, #tpu.memory_space<vmem>>) attributes {dimension_semantics = [#tpu.dimension_semantics<parallel>, #tpu.dimension_semantics<parallel>], iteration_bounds = array<i64: 2, 1>, scalar_prefetch = 0 : i64, scratch_operands = 0 : i64, tpu.core_type = #tpu.core_type<tc>, window_params = [{transform_indices = @transform_0, window_bounds = array<i64: 1, 4, 8, 512>}, {transform_indices = @transform_1, window_bounds = array<i64: 3, 4>}, {transform_indices = @transform_2, window_bounds = array<i64: 3>}, {transform_indices = @transform_3, window_bounds = array<i64: 1, 3, 8, 512>}]} {
    %c0 = arith.constant 0 : index
    %c0_0 = arith.constant 0 : index
    %c0_1 = arith.constant 0 : index
    %c0_2 = arith.constant 0 : index
    %0 = vector.load %arg2[%c0, %c0_0, %c0_1, %c0_2] : memref<1x4x8x512xf32, #tpu.memory_space<vmem>>, vector<1x1x8x512xf32>
    %1 = vector.shape_cast %0 : vector<1x1x8x512xf32> to vector<8x512xf32>
    %c0_3 = arith.constant 0 : index
    %c1 = arith.constant 1 : index
    %c0_4 = arith.constant 0 : index
    %c0_5 = arith.constant 0 : index
    %2 = vector.load %arg2[%c0_3, %c1, %c0_4, %c0_5] : memref<1x4x8x512xf32, #tpu.memory_space<vmem>>, vector<1x1x8x512xf32>
    %3 = vector.shape_cast %2 : vector<1x1x8x512xf32> to vector<8x512xf32>
    %c0_6 = arith.constant 0 : index
    %c2 = arith.constant 2 : index
    %c0_7 = arith.constant 0 : index
    %c0_8 = arith.constant 0 : index
    %4 = vector.load %arg2[%c0_6, %c2, %c0_7, %c0_8] : memref<1x4x8x512xf32, #tpu.memory_space<vmem>>, vector<1x1x8x512xf32>
    %5 = vector.shape_cast %4 : vector<1x1x8x512xf32> to vector<8x512xf32>
    %c0_9 = arith.constant 0 : index
    %c3 = arith.constant 3 : index
    %c0_10 = arith.constant 0 : index
    %c0_11 = arith.constant 0 : index
    %6 = vector.load %arg2[%c0_9, %c3, %c0_10, %c0_11] : memref<1x4x8x512xf32, #tpu.memory_space<vmem>>, vector<1x1x8x512xf32>
    %7 = vector.shape_cast %6 : vector<1x1x8x512xf32> to vector<8x512xf32>
    %c0_12 = arith.constant 0 : index
    %c0_13 = arith.constant 0 : index
    %8 = memref.load %arg3[%c0_12, %c0_13] : memref<3x4xf32, #tpu.memory_space<smem>>
    %9 = vector.broadcast %8 : f32 to vector<8x512xf32>
    %10 = arith.mulf %1, %9 : vector<8x512xf32>
    %c0_14 = arith.constant 0 : index
    %c1_15 = arith.constant 1 : index
    %11 = memref.load %arg3[%c0_14, %c1_15] : memref<3x4xf32, #tpu.memory_space<smem>>
    %12 = vector.broadcast %11 : f32 to vector<8x512xf32>
    %13 = arith.mulf %3, %12 : vector<8x512xf32>
    %14 = arith.addf %10, %13 : vector<8x512xf32>
    %c0_16 = arith.constant 0 : index
    %c2_17 = arith.constant 2 : index
    %15 = memref.load %arg3[%c0_16, %c2_17] : memref<3x4xf32, #tpu.memory_space<smem>>
    %16 = vector.broadcast %15 : f32 to vector<8x512xf32>
    %17 = arith.mulf %5, %16 : vector<8x512xf32>
    %18 = arith.addf %14, %17 : vector<8x512xf32>
    %c0_18 = arith.constant 0 : index
    %c3_19 = arith.constant 3 : index
    %19 = memref.load %arg3[%c0_18, %c3_19] : memref<3x4xf32, #tpu.memory_space<smem>>
    %20 = vector.broadcast %19 : f32 to vector<8x512xf32>
    %21 = arith.mulf %7, %20 : vector<8x512xf32>
    %22 = arith.addf %18, %21 : vector<8x512xf32>
    %c0_20 = arith.constant 0 : index
    %23 = memref.load %arg4[%c0_20] : memref<3xf32, #tpu.memory_space<smem>>
    %24 = vector.broadcast %23 : f32 to vector<8x512xf32>
    %25 = arith.addf %22, %24 : vector<8x512xf32>
    %26 = arith.negf %25 : vector<8x512xf32>
    %27 = math.exp %26 : vector<8x512xf32>
    %cst = arith.constant 1.000000e+00 : f32
    %28 = vector.broadcast %cst : f32 to vector<8x512xf32>
    %29 = arith.addf %28, %27 : vector<8x512xf32>
    %30 = arith.divf %28, %29 : vector<8x512xf32>
    %c0_21 = arith.constant 0 : index
    %c0_22 = arith.constant 0 : index
    %c0_23 = arith.constant 0 : index
    %c0_24 = arith.constant 0 : index
    %31 = vector.load %arg5[%c0_21, %c0_22, %c0_23, %c0_24] : memref<1x3x8x512xf32, #tpu.memory_space<vmem>>, vector<1x1x8x512xf32>
    %32 = vector.shape_cast %31 : vector<1x1x8x512xf32> to vector<8x512xf32>
    %33 = vector.shape_cast %30 : vector<8x512xf32> to vector<1x1x8x512xf32>
    tpu.vector_store %arg5[%c0_21, %c0_22, %c0_23, %c0_24], %33 {strides = array<i32>} : memref<1x3x8x512xf32, #tpu.memory_space<vmem>>, vector<1x1x8x512xf32>,
    %c1_25 = arith.constant 1 : index
    %c0_26 = arith.constant 0 : index
    %34 = memref.load %arg3[%c1_25, %c0_26] : memref<3x4xf32, #tpu.memory_space<smem>>
    %35 = vector.broadcast %34 : f32 to vector<8x512xf32>
    %36 = arith.mulf %1, %35 : vector<8x512xf32>
    %c1_27 = arith.constant 1 : index
    %c1_28 = arith.constant 1 : index
    %37 = memref.load %arg3[%c1_27, %c1_28] : memref<3x4xf32, #tpu.memory_space<smem>>
    %38 = vector.broadcast %37 : f32 to vector<8x512xf32>
    %39 = arith.mulf %3, %38 : vector<8x512xf32>
    %40 = arith.addf %36, %39 : vector<8x512xf32>
    %c1_29 = arith.constant 1 : index
    %c2_30 = arith.constant 2 : index
    %41 = memref.load %arg3[%c1_29, %c2_30] : memref<3x4xf32, #tpu.memory_space<smem>>
    %42 = vector.broadcast %41 : f32 to vector<8x512xf32>
    %43 = arith.mulf %5, %42 : vector<8x512xf32>
    %44 = arith.addf %40, %43 : vector<8x512xf32>
    %c1_31 = arith.constant 1 : index
    %c3_32 = arith.constant 3 : index
    %45 = memref.load %arg3[%c1_31, %c3_32] : memref<3x4xf32, #tpu.memory_space<smem>>
    %46 = vector.broadcast %45 : f32 to vector<8x512xf32>
    %47 = arith.mulf %7, %46 : vector<8x512xf32>
    %48 = arith.addf %44, %47 : vector<8x512xf32>
    %c1_33 = arith.constant 1 : index
    %49 = memref.load %arg4[%c1_33] : memref<3xf32, #tpu.memory_space<smem>>
    %50 = vector.broadcast %49 : f32 to vector<8x512xf32>
    %51 = arith.addf %48, %50 : vector<8x512xf32>
    %52 = arith.negf %51 : vector<8x512xf32>
    %53 = math.exp %52 : vector<8x512xf32>
    %cst_34 = arith.constant 1.000000e+00 : f32
    %54 = vector.broadcast %cst_34 : f32 to vector<8x512xf32>
    %55 = arith.addf %54, %53 : vector<8x512xf32>
    %56 = arith.divf %54, %55 : vector<8x512xf32>
    %c0_35 = arith.constant 0 : index
    %c1_36 = arith.constant 1 : index
    %c0_37 = arith.constant 0 : index
    %c0_38 = arith.constant 0 : index
    %57 = vector.load %arg5[%c0_35, %c1_36, %c0_37, %c0_38] : memref<1x3x8x512xf32, #tpu.memory_space<vmem>>, vector<1x1x8x512xf32>
    %58 = vector.shape_cast %57 : vector<1x1x8x512xf32> to vector<8x512xf32>
    %59 = vector.shape_cast %56 : vector<8x512xf32> to vector<1x1x8x512xf32>
    tpu.vector_store %arg5[%c0_35, %c1_36, %c0_37, %c0_38], %59 {strides = array<i32>} : memref<1x3x8x512xf32, #tpu.memory_space<vmem>>, vector<1x1x8x512xf32>,
    %c2_39 = arith.constant 2 : index
    %c0_40 = arith.constant 0 : index
    %60 = memref.load %arg3[%c2_39, %c0_40] : memref<3x4xf32, #tpu.memory_space<smem>>
    %61 = vector.broadcast %60 : f32 to vector<8x512xf32>
    %62 = arith.mulf %1, %61 : vector<8x512xf32>
    %c2_41 = arith.constant 2 : index
    %c1_42 = arith.constant 1 : index
    %63 = memref.load %arg3[%c2_41, %c1_42] : memref<3x4xf32, #tpu.memory_space<smem>>
    %64 = vector.broadcast %63 : f32 to vector<8x512xf32>
    %65 = arith.mulf %3, %64 : vector<8x512xf32>
    %66 = arith.addf %62, %65 : vector<8x512xf32>
    %c2_43 = arith.constant 2 : index
    %c2_44 = arith.constant 2 : index
    %67 = memref.load %arg3[%c2_43, %c2_44] : memref<3x4xf32, #tpu.memory_space<smem>>
    %68 = vector.broadcast %67 : f32 to vector<8x512xf32>
    %69 = arith.mulf %5, %68 : vector<8x512xf32>
    %70 = arith.addf %66, %69 : vector<8x512xf32>
    %c2_45 = arith.constant 2 : index
    %c3_46 = arith.constant 3 : index
    %71 = memref.load %arg3[%c2_45, %c3_46] : memref<3x4xf32, #tpu.memory_space<smem>>
    %72 = vector.broadcast %71 : f32 to vector<8x512xf32>
    %73 = arith.mulf %7, %72 : vector<8x512xf32>
    %74 = arith.addf %70, %73 : vector<8x512xf32>
    %c2_47 = arith.constant 2 : index
    %75 = memref.load %arg4[%c2_47] : memref<3xf32, #tpu.memory_space<smem>>
    %76 = vector.broadcast %75 : f32 to vector<8x512xf32>
    %77 = arith.addf %74, %76 : vector<8x512xf32>
    %78 = arith.negf %77 : vector<8x512xf32>
    %79 = math.exp %78 : vector<8x512xf32>
    %cst_48 = arith.constant 1.000000e+00 : f32
    %80 = vector.broadcast %cst_48 : f32 to vector<8x512xf32>
    %81 = arith.addf %80, %79 : vector<8x512xf32>
    %82 = arith.divf %80, %81 : vector<8x512xf32>
    %c0_49 = arith.constant 0 : index
    %c2_50 = arith.constant 2 : index
    %c0_51 = arith.constant 0 : index
    %c0_52 = arith.constant 0 : index
    %83 = vector.load %arg5[%c0_49, %c2_50, %c0_51, %c0_52] : memref<1x3x8x512xf32, #tpu.memory_space<vmem>>, vector<1x1x8x512xf32>
    %84 = vector.shape_cast %83 : vector<1x1x8x512xf32> to vector<8x512xf32>
    %85 = vector.shape_cast %82 : vector<8x512xf32> to vector<1x1x8x512xf32>
    tpu.vector_store %arg5[%c0_49, %c2_50, %c0_51, %c0_52], %85 {strides = array<i32>} : memref<1x3x8x512xf32, #tpu.memory_space<vmem>>, vector<1x1x8x512xf32>,
    return
  }
  func.func @transform_0(%arg0: i32, %arg1: i32) -> (i32, i32, i32, i32) {
    %c0_i32 = arith.constant 0 : i32
    %c0_i32_0 = arith.constant 0 : i32
    %c0_i32_1 = arith.constant 0 : i32
    return %arg0, %c0_i32, %arg1, %c0_i32_0 : i32, i32, i32, i32
  }
  func.func @transform_1(%arg0: i32, %arg1: i32) -> (i32, i32) {
    %c0_i32 = arith.constant 0 : i32
    %c0_i32_0 = arith.constant 0 : i32
    %c0_i32_1 = arith.constant 0 : i32
    return %c0_i32, %c0_i32_0 : i32, i32
  }
  func.func @transform_2(%arg0: i32, %arg1: i32) -> i32 {
    %c0_i32 = arith.constant 0 : i32
    %c0_i32_0 = arith.constant 0 : i32
    return %c0_i32 : i32
  }
  func.func @transform_3(%arg0: i32, %arg1: i32) -> (i32, i32, i32, i32) {
    %c0_i32 = arith.constant 0 : i32
    %c0_i32_0 = arith.constant 0 : i32
    %c0_i32_1 = arith.constant 0 : i32
    return %arg0, %c0_i32, %arg1, %c0_i32_0 : i32, i32, i32, i32
  }
}

</mosaic_0001>

<llo_original>
// kernel: output_transition.1
$region0: #{output_transition.1}
  #allocation0 [shape = 'u32[]', space=smem, size = 0x4, offset = 0x4, fixed_abs, tag = 'smem constant byte address 0x4 - core index']
  #allocation1 [shape = 'u32[144,128]{1,0:T(1,128)}', space=vmem, size = 0x12000, scoped, tag = 'internal scratch']
  %s0 = inlined_call_operand.vmem [shape: f32[2,4,8,512], index: 0, kind: input, shape index: {}]
  %s1 = inlined_call_operand.vmem [shape: f32[3,4], index: 1, kind: input, shape index: {}]
  %s2 = inlined_call_operand.vmem [shape: f32[3], index: 2, kind: input, shape index: {}]
  %s3 = inlined_call_operand.vmem [shape: f32[2,3,8,512], index: 3, kind: output, shape index: {}]
  %s4 = sld [smem:[#allocation0]]
  $region53: #{output_transition.1} parent=0
    _
  %s6 = ssub.s32 1, %s4
  %s7 = scalar_select 0, %s6, %s4
  $region1: #{output_transition.1} parent=0
    #allocation2 [shape = 'u8[2048]{0}', space=smem, size = 0x800, scoped, tag = 'input window, operand 1, single buffered']
    #allocation3 [shape = 's32[2]{0}', space=sflag, size = 0x8, scoped, tag = 'scoped memory for output_transition.1']
    #allocation4 [shape = 'u8[512]{0}', space=smem, size = 0x200, scoped, tag = 'input window, operand 2, single buffered']
    #allocation5 [shape = 's32[1]{0}', space=sflag, size = 0x4, scoped, tag = 'scoped memory for output_transition.1']
    %8 = vsyncpa [#allocation3], 0
    %9 = vsyncpa [#allocation5], 0
    loop: start=0, step=1, limit=4
    $region2: #{output_transition.1} parent=1 // loop_pre_header
      _
    $region3: #{output_transition.1} parent=1 // loop_header
      %s11 = sphi 0, %s15
      %p12 = scmp.ge.s32.totalorder %s11, 4
      %s18 = sphi 0, %s30
      %s19 = sphi 0, %s26
      %s20 = sphi 0, %s18
      %s21 = sphi 0, %s19
      %s22 = sphi 0, %s20
      %s23 = sphi 0, %s21
      %s35 = sphi 0, %s37
      %s38 = sphi 0, %s35
      %s39 = sphi 0, %s38
      %s55 = sphi 0, %s39
      %s59 = sphi 0, %s59
      %s61 = sphi 0, %s59
      %s62 = sphi 0, %s61
      %s76 = sphi 0, %s62
      %s80 = sphi 0, %s80
      %s82 = sphi 0, %s80
      %s83 = sphi 0, %s82
      %s97 = sphi 0, %s83
      %s105 = sphi 0, %s107
      %s108 = sphi 0, %s105
      %s109 = sphi 0, %s108
      %s125 = sphi 0, %s109
    $region4: #{output_transition.1} parent=1 // loop_header_branch
      %14 = sbr.rel (%p12) target = $region8
    $region5: #{output_transition.1} parent=1 // loop_body
      %s16 = ssub.s32 %s11, 1
      %s17 = ssub.s32 %s11, 2
      %s24 = sadd.s32 1, %s19
      %p25 = scmp.ge.s32.totalorder %s24, 1
      %s26 = scalar_select %p25, 0, %s24
      %s27 = sadd.s32 1, %s18
      %s28 = scalar_select %p25, %s27, %s18
      %p29 = scmp.ge.s32.totalorder %s28, 2
      %s30 = scalar_select %p29, 0, %s28
      %s31 = ssub.s32 %s18, %s30
      %s32 = ssub.s32 %s19, %s26
      %s33 = sor.u32 %s31, %s32
      %p34 = scmp.eq.s32.totalorder %s33, 0
      %s36 = sadd.s32 %s35, 1
      %s37 = scalar_select %p34, %s35, %s36
      %p40 = pneg %p34
      %p41 = scmp.eq.s32.totalorder %s11, 1
      %p42 = por %p40, %p41
      %p43 = scmp.ne.s32.totalorder %s35, %s38
      %p44 = scmp.eq.s32.totalorder %s11, 0
      %p45 = por %p43, %p44
      %p46 = scmp.ne.s32.totalorder %s35, %s38
      %p47 = scmp.eq.s32.totalorder %s16, 1
      %p48 = por %p46, %p47
      %p49 = scmp.ne.s32.totalorder %s38, %s39
      %p50 = scmp.eq.s32.totalorder %s16, 0
      %p51 = por %p49, %p50
      %p52 = scmp.ne.s32.totalorder %s38, %s39
      %p53 = scmp.eq.s32.totalorder %s17, 1
      %p54 = por %p52, %p53
      %p56 = scmp.ne.s32.totalorder %s39, %s55
      %p57 = scmp.eq.s32.totalorder %s17, 0
      %p58 = por %p56, %p57
      %s60 = sadd.s32 %s59, 1
      %p63 = scmp.eq.s32.totalorder %s11, 1
      %p64 = scmp.ne.s32.totalorder %s59, %s61
      %p65 = scmp.eq.s32.totalorder %s11, 0
      %p66 = por %p64, %p65
      %p67 = scmp.ne.s32.totalorder %s59, %s61
      %p68 = scmp.eq.s32.totalorder %s16, 1
      %p69 = por %p67, %p68
      %p70 = scmp.ne.s32.totalorder %s61, %s62
      %p71 = scmp.eq.s32.totalorder %s16, 0
      %p72 = por %p70, %p71
      %p73 = scmp.ne.s32.totalorder %s61, %s62
      %p74 = scmp.eq.s32.totalorder %s17, 1
      %p75 = por %p73, %p74
      %p77 = scmp.ne.s32.totalorder %s62, %s76
      %p78 = scmp.eq.s32.totalorder %s17, 0
      %p79 = por %p77, %p78
      %s81 = sadd.s32 %s80, 1
      %p84 = scmp.eq.s32.totalorder %s11, 1
      %p85 = scmp.ne.s32.totalorder %s80, %s82
      %p86 = scmp.eq.s32.totalorder %s11, 0
      %p87 = por %p85, %p86
      %p88 = scmp.ne.s32.totalorder %s80, %s82
      %p89 = scmp.eq.s32.totalorder %s16, 1
      %p90 = por %p88, %p89
      %p91 = scmp.ne.s32.totalorder %s82, %s83
      %p92 = scmp.eq.s32.totalorder %s16, 0
      %p93 = por %p91, %p92
      %p94 = scmp.ne.s32.totalorder %s82, %s83
      %p95 = scmp.eq.s32.totalorder %s17, 1
      %p96 = por %p94, %p95
      %p98 = scmp.ne.s32.totalorder %s83, %s97
      %p99 = scmp.eq.s32.totalorder %s17, 0
      %p100 = por %p98, %p99
      %s101 = ssub.s32 %s18, %s30
      %s102 = ssub.s32 %s19, %s26
      %s103 = sor.u32 %s101, %s102
      %p104 = scmp.eq.s32.totalorder %s103, 0
      %s106 = sadd.s32 %s105, 1
      %s107 = scalar_select %p104, %s105, %s106
      %p110 = pneg %p104
      %p111 = scmp.eq.s32.totalorder %s11, 1
      %p112 = por %p110, %p111
      %p113 = scmp.ne.s32.totalorder %s105, %s108
      %p114 = scmp.eq.s32.totalorder %s11, 0
      %p115 = por %p113, %p114
      %p116 = scmp.ne.s32.totalorder %s105, %s108
      %p117 = scmp.eq.s32.totalorder %s16, 1
      %p118 = por %p116, %p117
      %p119 = scmp.ne.s32.totalorder %s108, %s109
      %p120 = scmp.eq.s32.totalorder %s16, 0
      %p121 = por %p119, %p120
      %p122 = scmp.ne.s32.totalorder %s108, %s109
      %p123 = scmp.eq.s32.totalorder %s17, 1
      %p124 = por %p122, %p123
      %p126 = scmp.ne.s32.totalorder %s109, %s125
      %p127 = scmp.eq.s32.totalorder %s17, 0
      %p128 = por %p126, %p127
      %p129 = scmp.le.s32.totalorder 1, %s11
      %p130 = scmp.lt.s32.totalorder %s11, 3
      %p131 = pnand %p129, %p130
      %p132 = pneg %p131
      // Predicated region
      $region9: #{output_transition.1} parent=5 // pred_check
        _
      $region10: #{output_transition.1} parent=5 // pred_check_branch
        %134 = sbr.rel (%p131) target = $region12
      $region11: #{output_transition.1} parent=5 // pred_region
        %s135 = ssub.s32 %s11, 1
        // Predicated region
        $region13: #{output_transition.1} parent=11 // pred_check
          %p136 = pneg %p72
        $region14: #{output_transition.1} parent=11 // pred_check_branch
          %138 = sbr.rel (%p136) target = $region16
        $region15: #{output_transition.1} parent=11 // pred_region
          %s140 = ssub.s32 64, 64
          %141 = vsyncadd [#allocation3], %s140
          %s143 = sshll.u32 %s1, 4
          %s144 = int_to_ptr.vmem [resolvable:$true] %s143
          %146 = dma.vmem_to_smem %s144, 64, [#allocation2], [#allocation3]
        $region16: #{output_transition.1} parent=11 // pred_fallthru
          _
        // Predicated region
        $region17: #{output_transition.1} parent=11 // pred_check
          %p147 = pneg %p93
        $region18: #{output_transition.1} parent=11 // pred_check_branch
          %149 = sbr.rel (%p147) target = $region20
        $region19: #{output_transition.1} parent=11 // pred_region
          %s151 = ssub.s32 16, 16
          %152 = vsyncadd [#allocation5], %s151
          %s154 = sshll.u32 %s2, 4
          %s155 = int_to_ptr.vmem [resolvable:$true] %s154
          %157 = dma.vmem_to_smem %s155, 16, [#allocation4], [#allocation5]
        $region20: #{output_transition.1} parent=11 // pred_fallthru
          _
      $region12: #{output_transition.1} parent=5 // pred_fallthru
        _
      %p158 = scmp.lt.s32.totalorder %s11, 2
      // Predicated region
      $region21: #{output_transition.1} parent=5 // pred_check
        %p159 = pneg %p158
      $region22: #{output_transition.1} parent=5 // pred_check_branch
        %161 = sbr.rel (%p159) target = $region24
      $region23: #{output_transition.1} parent=5 // pred_region
        // Predicated region
        $region25: #{output_transition.1} parent=23 // pred_check
          %p162 = pneg %p45
        $region26: #{output_transition.1} parent=23 // pred_check_branch
          %164 = sbr.rel (%p162) target = $region28
        $region27: #{output_transition.1} parent=23 // pred_region
          %p165 = scmp.lt.s32.totalorder %s18, 1
          %s166 = scalar_select %p165, %s18, 1
          %p167 = scmp.lt.s32.totalorder %s19, 0
          %s168 = scalar_select %p167, %s19, 0
          %s169 = smul.addr %s168, 4
          %s170 = smul.addr %s166, 16
          %s171 = sadd.s32 %s169, %s170
          %s172 = smul.addr %s171, 8
          %s173 = scalar_lea.vmem %s0, %s172
        $region28: #{output_transition.1} parent=23 // pred_fallthru
          _
      $region24: #{output_transition.1} parent=5 // pred_fallthru
        _
      %p174 = scmp.le.s32.totalorder 1, %s11
      %p175 = scmp.lt.s32.totalorder %s11, 3
      %p176 = pnand %p174, %p175
      %p177 = pneg %p176
      // Predicated region
      $region29: #{output_transition.1} parent=5 // pred_check
        _
      $region30: #{output_transition.1} parent=5 // pred_check_branch
        %179 = sbr.rel (%p176) target = $region32
      $region31: #{output_transition.1} parent=5 // pred_region
        %s180 = ssub.s32 %s11, 1
        // Predicated region
        $region33: #{output_transition.1} parent=31 // pred_check
          %p181 = pneg %p72
        $region34: #{output_transition.1} parent=31 // pred_check_branch
          %183 = sbr.rel (%p181) target = $region36
        $region35: #{output_transition.1} parent=31 // pred_region
          %184 = dma.done [#allocation3], 64
        $region36: #{output_transition.1} parent=31 // pred_fallthru
          _
        // Predicated region
        $region37: #{output_transition.1} parent=31 // pred_check
          %p185 = pneg %p93
        $region38: #{output_transition.1} parent=31 // pred_check_branch
          %187 = sbr.rel (%p185) target = $region40
        $region39: #{output_transition.1} parent=31 // pred_region
          %188 = dma.done [#allocation5], 16
        $region40: #{output_transition.1} parent=31 // pred_fallthru
          _
        %189 = sfence
        %p190 = scmp.lt.s32.totalorder %s20, 1
        %s191 = scalar_select %p190, %s20, 1
        %p192 = scmp.lt.s32.totalorder %s21, 0
        %s193 = scalar_select %p192, %s21, 0
        %s194 = smul.addr %s193, 4
        %s195 = smul.addr %s191, 16
        %s196 = sadd.s32 %s194, %s195
        %s197 = smul.addr %s196, 8
        %s198 = scalar_lea.vmem %s0, %s197
        %p199 = pneg %p51
        %p200 = pneg %p48
        %p201 = pneg %p72
        %p202 = pneg %p69
        %p203 = pneg %p93
        %p204 = pneg %p90
        %p205 = pneg %p121
        %p206 = pneg %p118
        %p207 = scmp.lt.s32.totalorder %s20, 1
        %s208 = scalar_select %p207, %s20, 1
        %p209 = scmp.lt.s32.totalorder %s21, 0
        %s210 = scalar_select %p209, %s21, 0
        %s211 = smul.addr %s210, 4
        %s212 = smul.addr %s208, 12
        %s213 = sadd.s32 %s211, %s212
        %s214 = smul.addr %s213, 8
        %s215 = scalar_lea.vmem %s3, %s214
        %p216 = scmp.lt.s32.totalorder %s20, 1
        %s217 = scalar_select %p216, %s20, 1
        %p218 = scmp.lt.s32.totalorder %s21, 0
        %s219 = scalar_select %p218, %s21, 0
        %s220 = smul.addr %s219, 4
        %s221 = smul.addr %s217, 16
        %s222 = sadd.s32 %s220, %s221
        %s223 = smul.addr %s222, 8
        %s224 = scalar_lea.vmem %s0, %s223
        %p225 = scmp.lt.s32.totalorder %s20, 1
        %s226 = scalar_select %p225, %s20, 1
        %p227 = scmp.lt.s32.totalorder %s21, 0
        %s228 = scalar_select %p227, %s21, 0
        %s229 = smul.addr %s228, 4
        %s230 = smul.addr %s226, 12
        %s231 = sadd.s32 %s229, %s230
        %s232 = smul.addr %s231, 8
        %s233 = scalar_lea.vmem %s3, %s232
        %v234 = vld [vmem:[%s224] sm:$0xff]
        %v235 = vld [vmem:[%s224 + $0x8] sm:$0xff]
        %v236 = vld [vmem:[%s224 + $0x10] sm:$0xff]
        %v237 = vld [vmem:[%s224 + $0x18] sm:$0xff]
        %s238 = scalar_lea.vmem %s224, 32
        %v239 = vld [vmem:[%s238] sm:$0xff]
        %v240 = vld [vmem:[%s238 + $0x8] sm:$0xff]
        %v241 = vld [vmem:[%s238 + $0x10] sm:$0xff]
        %v242 = vld [vmem:[%s238 + $0x18] sm:$0xff]
        %s243 = scalar_lea.vmem %s224, 64
        %v244 = vld [vmem:[%s243] sm:$0xff]
        %v245 = vld [vmem:[%s243 + $0x8] sm:$0xff]
        %v246 = vld [vmem:[%s243 + $0x10] sm:$0xff]
        %v247 = vld [vmem:[%s243 + $0x18] sm:$0xff]
        %s248 = scalar_lea.vmem %s224, 96
        %v249 = vld [vmem:[%s248] sm:$0xff]
        %v250 = vld [vmem:[%s248 + $0x8] sm:$0xff]
        %v251 = vld [vmem:[%s248 + $0x10] sm:$0xff]
        %v252 = vld [vmem:[%s248 + $0x18] sm:$0xff]
        %s253 = sld [smem:[#allocation2]]
        %v254 = vstv %s253
        %v255 = vmul.f32 %v234, %v254
        %v256 = vmul.f32 %v235, %v254
        %v257 = vmul.f32 %v236, %v254
        %v258 = vmul.f32 %v237, %v254
        %s259 = sld [smem:[#allocation2 + $0x1]]
        %v260 = vstv %s259
        %v261 = vmul.f32 %v239, %v260
        %v262 = vmul.f32 %v240, %v260
        %v263 = vmul.f32 %v241, %v260
        %v264 = vmul.f32 %v242, %v260
        %v265 = vadd.f32 %v255, %v261
        %v266 = vadd.f32 %v256, %v262
        %v267 = vadd.f32 %v257, %v263
        %v268 = vadd.f32 %v258, %v264
        %s269 = sld [smem:[#allocation2 + $0x2]]
        %v270 = vstv %s269
        %v271 = vmul.f32 %v244, %v270
        %v272 = vmul.f32 %v245, %v270
        %v273 = vmul.f32 %v246, %v270
        %v274 = vmul.f32 %v247, %v270
        %v275 = vadd.f32 %v265, %v271
        %v276 = vadd.f32 %v266, %v272
        %v277 = vadd.f32 %v267, %v273
        %v278 = vadd.f32 %v268, %v274
        %s279 = sld [smem:[#allocation2 + $0x3]]
        %v280 = vstv %s279
        %v281 = vmul.f32 %v249, %v280
        %v282 = vmul.f32 %v250, %v280
        %v283 = vmul.f32 %v251, %v280
        %v284 = vmul.f32 %v252, %v280
        %v285 = vadd.f32 %v275, %v281
        %v286 = vadd.f32 %v276, %v282
        %v287 = vadd.f32 %v277, %v283
        %v288 = vadd.f32 %v278, %v284
        %s289 = sld [smem:[#allocation4]]
        %v290 = vstv %s289
        %v291 = vadd.f32 %v285, %v290
        %v292 = vadd.f32 %v286, %v290
        %v293 = vadd.f32 %v287, %v290
        %v294 = vadd.f32 %v288, %v290
        %v295 = vxor.u32 %v291, 2147483648
        %v296 = vxor.u32 %v292, 2147483648
        %v297 = vxor.u32 %v293, 2147483648
        %v298 = vxor.u32 %v294, 2147483648
        %v299 = vmul.f32 %v295, 1.442695
        %v300 = vpow.pop %v299
        %v301 = vmul.f32 %v296, 1.442695
        %v302 = vpow.pop %v301
        %v303 = vmul.f32 %v297, 1.442695
        %v304 = vpow.pop %v303
        %v305 = vmul.f32 %v298, 1.442695
        %v306 = vpow.pop %v305
        %v307 = vadd.f32 %v300, 1.0
        %v308 = vadd.f32 %v302, 1.0
        %v309 = vadd.f32 %v304, 1.0
        %v310 = vadd.f32 %v306, 1.0
        %v311 = vrcp.pop %v307
        %v312 = vmul.f32 1.0, %v311
        %v313 = vrcp.pop %v308
        %v314 = vmul.f32 1.0, %v313
        %v315 = vrcp.pop %v309
        %v316 = vmul.f32 1.0, %v315
        %v317 = vrcp.pop %v310
        %v318 = vmul.f32 1.0, %v317
        %319 = vst [vmem:[%s233] sm:$0xff] %v312
        %320 = vst [vmem:[%s233 + $0x8] sm:$0xff] %v314
        %321 = vst [vmem:[%s233 + $0x10] sm:$0xff] %v316
        %322 = vst [vmem:[%s233 + $0x18] sm:$0xff] %v318
        %s323 = sld [smem:[#allocation2 + $0x80]]
        %v324 = vstv %s323
        %v325 = vmul.f32 %v234, %v324
        %v326 = vmul.f32 %v235, %v324
        %v327 = vmul.f32 %v236, %v324
        %v328 = vmul.f32 %v237, %v324
        %s329 = sld [smem:[#allocation2 + $0x81]]
        %v330 = vstv %s329
        %v331 = vmul.f32 %v239, %v330
        %v332 = vmul.f32 %v240, %v330
        %v333 = vmul.f32 %v241, %v330
        %v334 = vmul.f32 %v242, %v330
        %v335 = vadd.f32 %v325, %v331
        %v336 = vadd.f32 %v326, %v332
        %v337 = vadd.f32 %v327, %v333
        %v338 = vadd.f32 %v328, %v334
        %s339 = sld [smem:[#allocation2 + $0x82]]
        %v340 = vstv %s339
        %v341 = vmul.f32 %v244, %v340
        %v342 = vmul.f32 %v245, %v340
        %v343 = vmul.f32 %v246, %v340
        %v344 = vmul.f32 %v247, %v340
        %v345 = vadd.f32 %v335, %v341
        %v346 = vadd.f32 %v336, %v342
        %v347 = vadd.f32 %v337, %v343
        %v348 = vadd.f32 %v338, %v344
        %s349 = sld [smem:[#allocation2 + $0x83]]
        %v350 = vstv %s349
        %v351 = vmul.f32 %v249, %v350
        %v352 = vmul.f32 %v250, %v350
        %v353 = vmul.f32 %v251, %v350
        %v354 = vmul.f32 %v252, %v350
        %v355 = vadd.f32 %v345, %v351
        %v356 = vadd.f32 %v346, %v352
        %v357 = vadd.f32 %v347, %v353
        %v358 = vadd.f32 %v348, %v354
        %s359 = sld [smem:[#allocation4 + $0x1]]
        %v360 = vstv %s359
        %v361 = vadd.f32 %v355, %v360
        %v362 = vadd.f32 %v356, %v360
        %v363 = vadd.f32 %v357, %v360
        %v364 = vadd.f32 %v358, %v360
        %v365 = vxor.u32 %v361, 2147483648
        %v366 = vxor.u32 %v362, 2147483648
        %v367 = vxor.u32 %v363, 2147483648
        %v368 = vxor.u32 %v364, 2147483648
        %v369 = vmul.f32 %v365, 1.442695
        %v370 = vpow.pop %v369
        %v371 = vmul.f32 %v366, 1.442695
        %v372 = vpow.pop %v371
        %v373 = vmul.f32 %v367, 1.442695
        %v374 = vpow.pop %v373
        %v375 = vmul.f32 %v368, 1.442695
        %v376 = vpow.pop %v375
        %v377 = vadd.f32 %v370, 1.0
        %v378 = vadd.f32 %v372, 1.0
        %v379 = vadd.f32 %v374, 1.0
        %v380 = vadd.f32 %v376, 1.0
        %v381 = vrcp.pop %v377
        %v382 = vmul.f32 1.0, %v381
        %v383 = vrcp.pop %v378
        %v384 = vmul.f32 1.0, %v383
        %v385 = vrcp.pop %v379
        %v386 = vmul.f32 1.0, %v385
        %v387 = vrcp.pop %v380
        %v388 = vmul.f32 1.0, %v387
        %s389 = scalar_lea.vmem %s233, 32
        %390 = vst [vmem:[%s389] sm:$0xff] %v382
        %391 = vst [vmem:[%s389 + $0x8] sm:$0xff] %v384
        %392 = vst [vmem:[%s389 + $0x10] sm:$0xff] %v386
        %393 = vst [vmem:[%s389 + $0x18] sm:$0xff] %v388
        %s394 = sld [smem:[#allocation2 + $0x100]]
        %v395 = vstv %s394
        %v396 = vmul.f32 %v234, %v395
        %v397 = vmul.f32 %v235, %v395
        %v398 = vmul.f32 %v236, %v395
        %v399 = vmul.f32 %v237, %v395
        %s400 = sld [smem:[#allocation2 + $0x101]]
        %v401 = vstv %s400
        %v402 = vmul.f32 %v239, %v401
        %v403 = vmul.f32 %v240, %v401
        %v404 = vmul.f32 %v241, %v401
        %v405 = vmul.f32 %v242, %v401
        %v406 = vadd.f32 %v396, %v402
        %v407 = vadd.f32 %v397, %v403
        %v408 = vadd.f32 %v398, %v404
        %v409 = vadd.f32 %v399, %v405
        %s410 = sld [smem:[#allocation2 + $0x102]]
        %v411 = vstv %s410
        %v412 = vmul.f32 %v244, %v411
        %v413 = vmul.f32 %v245, %v411
        %v414 = vmul.f32 %v246, %v411
        %v415 = vmul.f32 %v247, %v411
        %v416 = vadd.f32 %v406, %v412
        %v417 = vadd.f32 %v407, %v413
        %v418 = vadd.f32 %v408, %v414
        %v419 = vadd.f32 %v409, %v415
        %s420 = sld [smem:[#allocation2 + $0x103]]
        %v421 = vstv %s420
        %v422 = vmul.f32 %v249, %v421
        %v423 = vmul.f32 %v250, %v421
        %v424 = vmul.f32 %v251, %v421
        %v425 = vmul.f32 %v252, %v421
        %v426 = vadd.f32 %v416, %v422
        %v427 = vadd.f32 %v417, %v423
        %v428 = vadd.f32 %v418, %v424
        %v429 = vadd.f32 %v419, %v425
        %s430 = sld [smem:[#allocation4 + $0x2]]
        %v431 = vstv %s430
        %v432 = vadd.f32 %v426, %v431
        %v433 = vadd.f32 %v427, %v431
        %v434 = vadd.f32 %v428, %v431
        %v435 = vadd.f32 %v429, %v431
        %v436 = vxor.u32 %v432, 2147483648
        %v437 = vxor.u32 %v433, 2147483648
        %v438 = vxor.u32 %v434, 2147483648
        %v439 = vxor.u32 %v435, 2147483648
        %v440 = vmul.f32 %v436, 1.442695
        %v441 = vpow.pop %v440
        %v442 = vmul.f32 %v437, 1.442695
        %v443 = vpow.pop %v442
        %v444 = vmul.f32 %v438, 1.442695
        %v445 = vpow.pop %v444
        %v446 = vmul.f32 %v439, 1.442695
        %v447 = vpow.pop %v446
        %v448 = vadd.f32 %v441, 1.0
        %v449 = vadd.f32 %v443, 1.0
        %v450 = vadd.f32 %v445, 1.0
        %v451 = vadd.f32 %v447, 1.0
        %v452 = vrcp.pop %v448
        %v453 = vmul.f32 1.0, %v452
        %v454 = vrcp.pop %v449
        %v455 = vmul.f32 1.0, %v454
        %v456 = vrcp.pop %v450
        %v457 = vmul.f32 1.0, %v456
        %v458 = vrcp.pop %v451
        %v459 = vmul.f32 1.0, %v458
        %s460 = scalar_lea.vmem %s233, 64
        %461 = vst [vmem:[%s460] sm:$0xff] %v453
        %462 = vst [vmem:[%s460 + $0x8] sm:$0xff] %v455
        %463 = vst [vmem:[%s460 + $0x10] sm:$0xff] %v457
        %464 = vst [vmem:[%s460 + $0x18] sm:$0xff] %v459
        %p465 = scmp.lt.s32.totalorder %s20, 1
        %s466 = scalar_select %p465, %s20, 1
        %p467 = scmp.lt.s32.totalorder %s21, 0
        %s468 = scalar_select %p467, %s21, 0
        %s469 = smul.addr %s468, 4
        %s470 = smul.addr %s466, 12
        %s471 = sadd.s32 %s469, %s470
        %s472 = smul.addr %s471, 8
        %s473 = scalar_lea.vmem %s3, %s472
        // Predicated region
        $region41: #{output_transition.1} parent=31 // pred_check
          %p474 = pneg %p118
        $region42: #{output_transition.1} parent=31 // pred_check_branch
          %476 = sbr.rel (%p474) target = $region44
        $region43: #{output_transition.1} parent=31 // pred_region
          _
        $region44: #{output_transition.1} parent=31 // pred_fallthru
          _
      $region32: #{output_transition.1} parent=5 // pred_fallthru
        _
      %p477 = scmp.le.s32.totalorder 2, %s11
      // Predicated region
      $region45: #{output_transition.1} parent=5 // pred_check
        %p478 = pneg %p477
      $region46: #{output_transition.1} parent=5 // pred_check_branch
        %480 = sbr.rel (%p478) target = $region48
      $region47: #{output_transition.1} parent=5 // pred_region
        %s481 = ssub.s32 %s11, 2
        // Predicated region
        $region49: #{output_transition.1} parent=47 // pred_check
          %p482 = pneg %p124
        $region50: #{output_transition.1} parent=47 // pred_check_branch
          %484 = sbr.rel (%p482) target = $region52
        $region51: #{output_transition.1} parent=47 // pred_region
          %p485 = scmp.lt.s32.totalorder %s22, 1
          %s486 = scalar_select %p485, %s22, 1
          %p487 = scmp.lt.s32.totalorder %s23, 0
          %s488 = scalar_select %p487, %s23, 0
          %s489 = smul.addr %s488, 4
          %s490 = smul.addr %s486, 12
          %s491 = sadd.s32 %s489, %s490
          %s492 = smul.addr %s491, 8
          %s493 = scalar_lea.vmem %s3, %s492
        $region52: #{output_transition.1} parent=47 // pred_fallthru
          _
      $region48: #{output_transition.1} parent=5 // pred_fallthru
        _
    $region6: #{output_transition.1} parent=1 // loop_footer
      %s15 = sadd.s32 1, %s11
    $region7: #{output_transition.1} parent=1 // loop_footer_branch
      %10 = sbr.rel target = $region3
    $region8: #{output_transition.1} parent=1 // loop_exit
      _
    %494 = vsyncpa [#allocation3], 1
    %s495 = scalar_lea.sflag [#allocation3], 1
    %496 = vsyncpa %s495, 1
    %497 = vsyncpa [#allocation5], 1

</llo_original>
